<compile_context>
chip_gen: v7x
topology: tpu7x:2x2x1
jax: 0.10.0
libtpu: 0.0.40
codegen_flags: <defaults>
</compile_context>

<pallas_src>
import jax
import jax.numpy as jnp
from jax.experimental import pallas as pl
from jax.experimental.pallas import tpu as pltpu

EPS = 1e-6


def _round_up(x, m):
    return (x + m - 1) // m * m


# ---------------------------------------------------------------------------
# kernel
# ---------------------------------------------------------------------------
def _layernorm_f32(x, a2, b2):
    """Torch-style LayerNorm on a (tm, D) f32 tile (unbiased std, (std+eps) norm)."""
    d = x.shape[-1]
    mean = jnp.mean(x, axis=-1, keepdims=True)
    diff = x - mean
    var_unbiased = jnp.sum(diff * diff, axis=-1, keepdims=True) / (d - 1)
    std = jnp.sqrt(var_unbiased)
    return a2 * (diff / (std + EPS)) + b2


def fused_encoder_kernel(x_ref, w_ref, p_ref, fp_ref, o_ref):
    """All N layers + final LayerNorm on one (tm, D) row tile kept in VMEM.

    x_ref:  (tm, D)    f32 activation row tile
    w_ref:  (N, D, D)  f32 stacked layer weights (VMEM-resident across grid)
    p_ref:  (N, 3, D)  f32 per-layer [a_2; b_2; bias] (VMEM-resident)
    fp_ref: (2, D)     f32 final-norm [a_2; b_2] (VMEM-resident)
    """
    x = x_ref[...].astype(jnp.float32)
    n_layers = w_ref.shape[0]

    # N is static -> unrolled; all layer indexing is static slices.
    for l in range(n_layers):
        params = p_ref[l]                 # (3, D)
        a2 = params[0:1, :]
        b2 = params[1:2, :]
        bw = params[2:3, :]
        normed = _layernorm_f32(x, a2, b2)
        y = jnp.dot(normed, w_ref[l], preferred_element_type=jnp.float32) + bw
        # dropout (eval mode => identity) + residual add
        x = x + y

    fp = fp_ref[...]                      # (2, D)
    o_ref[...] = _layernorm_f32(x, fp[0:1, :], fp[1:2, :]).astype(o_ref.dtype)


# ---------------------------------------------------------------------------
# wrapper
# ---------------------------------------------------------------------------
def _choose_tm(M, D, N, tm_req):
    # Guarantee >= 2 grid steps whenever possible so v7x megacore can shard rows.
    half_rows = _round_up(-(-M // 2), 8)
    tm_eff = max(8, min(_round_up(tm_req, 8), max(8, half_rows)))

    # Keep double-buffered in/out tiles + resident weights/params + kernel
    # temporaries under a conservative VMEM budget.
    budget = 40 << 20

    def need(t):
        return (4 * t * D * 4                # double-buffered f32 in + out tiles
                + 2 * N * D * D * 4          # stacked weights (2 bufs, conservative)
                + 2 * (3 * N + 2) * D * 4    # stacked params
                + 4 * t * D * 4)             # per-layer temporaries (normed, y, ...)

    while tm_eff > 8 and need(tm_eff) > budget:
        tm_eff = max(8, _round_up(tm_eff // 2, 8))
    return tm_eff


def _vmem_limit_bytes(tm, D, N):
    need = (4 * tm * D * 4
            + 2 * N * D * D * 4
            + 2 * (3 * N + 2) * D * 4
            + 4 * tm * D * 4
            + (4 << 20))                     # compiler headroom
    return int(min(max(need, 16 << 20), 48 << 20))


def prepare_encoder_params(layer_params, norm_a2, norm_b2):
    """Hoisted (call once): stack per-layer params into kernel-friendly blocks."""
    w = jnp.stack([w for (_, _, w, _) in layer_params]).astype(jnp.float32)       # (N, D, D)
    p = jnp.stack([jnp.stack([a2, b2, bw])
                   for (a2, b2, _, bw) in layer_params]).astype(jnp.float32)      # (N, 3, D)
    fp = jnp.stack([norm_a2, norm_b2]).astype(jnp.float32)                        # (2, D)
    return w, p, fp


def encoder_forward(x, mask, stacked_params, *, tm=1024):
    """Encoder.forward(x, mask). x: (B, S, D); stacked_params from prepare_encoder_params."""
    # TODO(synk): `mask` is consumed by the real grouped-attention EncoderLayer,
    # which is not part of the provided spec; the synthetic Linear layer ignores it.
    del mask
    w, p, fp = stacked_params
    B, S, D = x.shape
    N = w.shape[0]
    M = B * S

    tm_eff = _choose_tm(M, D, N, tm)
    grid = (pl.cdiv(M, tm_eff),)

    x2 = x.reshape(M, D).astype(jnp.float32)   # no pad: ragged last block handled by Pallas

    cost = pl.CostEstimate(
        flops=2 * M * D * D * N + 10 * M * D * (N + 1),
        transcendentals=M * (N + 1),
        bytes_accessed=2 * M * D * 4 + N * D * D * 4 + (3 * N + 2) * D * 4)

    out = pl.pallas_call(
        fused_encoder_kernel,
        out_shape=jax.ShapeDtypeStruct((M, D), jnp.float32),
        grid_spec=pltpu.PrefetchScalarGridSpec(
            num_scalar_prefetch=0,
            grid=grid,
            in_specs=[
                pl.BlockSpec((tm_eff, D), lambda i: (i, 0)),      # activation row tile
                pl.BlockSpec((N, D, D), lambda i: (0, 0, 0)),     # stacked weights (resident)
                pl.BlockSpec((N, 3, D), lambda i: (0, 0, 0)),     # stacked layer params
                pl.BlockSpec((2, D), lambda i: (0, 0)),           # final-norm params
            ],
            out_specs=pl.BlockSpec((tm_eff, D), lambda i: (i, 0)),
        ),
        compiler_params=pltpu.CompilerParams(
            dimension_semantics=("parallel",),
            vmem_limit_bytes=_vmem_limit_bytes(tm_eff, D, N)),
        cost_estimate=cost,
    )(x2, w, p, fp)

    return out.reshape(B, S, D).astype(x.dtype)


# ---------------------------------------------------------------------------
# pure-JAX reference (full f32, exact divide) matching PyTorch semantics
# ---------------------------------------------------------------------------
def _layernorm_ref(x, a2, b2):
    d = x.shape[-1]
    mean = jnp.mean(x, axis=-1, keepdims=True)
    diff = x - mean
    std = jnp.sqrt(jnp.sum(diff * diff, axis=-1, keepdims=True) / (d - 1))
    return a2 * diff / (std + EPS) + b2


def encoder_reference(x, mask, layer_params, norm_a2, norm_b2):
    del mask
    h = x.astype(jnp.float32)
    for (a2, b2, w, bw) in layer_params:
        normed = _layernorm_ref(h, a2, b2)
        h = h + (normed @ w + bw)
    return _layernorm_ref(h, norm_a2, norm_b2).astype(x.dtype)


if __name__ == "__main__":
    B, S, D, N = 2, 8, 128, 2   # D = 128 keeps the feature axis lane-dense
    key = jax.random.PRNGKey(0)
    kx, key = jax.random.split(key)

    x = jax.random.normal(kx, (B, S, D), dtype=jnp.float32)
    # mask layout per the docstring: (batch, 4, S, S); unused by synthetic layers.
    mask = jnp.ones((B, 4, S, S), dtype=jnp.float32)

    layer_params = []
    for _ in range(N):
        ka, kb2, kw, kb, key = jax.random.split(key, 5)
        a2 = 1.0 + 0.1 * jax.random.normal(ka, (D,), dtype=jnp.float32)
        b2 = 0.1 * jax.random.normal(kb2, (D,), dtype=jnp.float32)
        w = jax.random.normal(kw, (D, D), dtype=jnp.float32) * 0.05
        bw = jax.random.normal(kb, (D,), dtype=jnp.float32) * 0.05
        layer_params.append((a2, b2, w, bw))

    norm_a2 = jnp.ones((D,), jnp.float32)
    norm_b2 = jnp.zeros((D,), jnp.float32)

    # Parameter prep hoisted out of the forward path (done once).
    stacked = prepare_encoder_params(layer_params, norm_a2, norm_b2)

    out = encoder_forward(x, mask, stacked, tm=1024)
    out = jax.block_until_ready(out)

    ref = encoder_reference(x, mask, layer_params, norm_a2, norm_b2)
    assert out.shape == (B, S, D)
    # full-f32 kernel + exact divide -> tight agreement with the reference
    err = float(jnp.max(jnp.abs(out - ref)))
    assert err < 1e-4, f"max abs err {err}"

    print("KERNEL_OK")
</pallas_src>

<mosaic_0001>
module attributes {stable_mosaic.version = 11 : i64} {
  func.func @fused_encoder_kernel(%arg0: i32, %arg1: memref<8x128xf32, #tpu.memory_space<vmem>>, %arg2: memref<2x128x128xf32, #tpu.memory_space<vmem>>, %arg3: memref<2x3x128xf32, #tpu.memory_space<vmem>>, %arg4: memref<2x128xf32, #tpu.memory_space<vmem>>, %arg5: memref<8x128xf32, #tpu.memory_space<vmem>>) attributes {dimension_semantics = [#tpu.dimension_semantics<parallel>], iteration_bounds = array<i64: 2>, scalar_prefetch = 0 : i64, scratch_operands = 0 : i64, tpu.core_type = #tpu.core_type<tc>, window_params = [{transform_indices = @transform_0, window_bounds = array<i64: 8, 128>}, {pipeline_mode = #tpu.pipeline_mode<synchronous>, transform_indices = @transform_1, window_bounds = array<i64: 2, 128, 128>}, {pipeline_mode = #tpu.pipeline_mode<synchronous>, transform_indices = @transform_2, window_bounds = array<i64: 2, 3, 128>}, {pipeline_mode = #tpu.pipeline_mode<synchronous>, transform_indices = @transform_3, window_bounds = array<i64: 2, 128>}, {transform_indices = @transform_4, window_bounds = array<i64: 8, 128>}]} {
    %c0 = arith.constant 0 : index
    %c0_0 = arith.constant 0 : index
    %0 = vector.load %arg1[%c0, %c0_0] : memref<8x128xf32, #tpu.memory_space<vmem>>, vector<8x128xf32>
    %c0_1 = arith.constant 0 : index
    %c0_2 = arith.constant 0 : index
    %c0_3 = arith.constant 0 : index
    %1 = vector.load %arg3[%c0_1, %c0_2, %c0_3] : memref<2x3x128xf32, #tpu.memory_space<vmem>>, vector<1x3x128xf32>
    %2 = vector.shape_cast %1 : vector<1x3x128xf32> to vector<3x128xf32>
    %3 = vector.extract_strided_slice %2 {offsets = [0, 0], sizes = [1, 128], strides = [1, 1]} : vector<3x128xf32> to vector<1x128xf32>
    %4 = vector.extract_strided_slice %2 {offsets = [1, 0], sizes = [1, 128], strides = [1, 1]} : vector<3x128xf32> to vector<1x128xf32>
    %5 = vector.extract_strided_slice %2 {offsets = [2, 0], sizes = [1, 128], strides = [1, 1]} : vector<3x128xf32> to vector<1x128xf32>
    %cst = arith.constant dense<0.000000e+00> : vector<8xf32>
    %6 = vector.multi_reduction <add>, %0, %cst [1] : vector<8x128xf32> to vector<8xf32>
    %7 = vector.shape_cast %6 : vector<8xf32> to vector<8x1xf32>
    %cst_4 = arith.constant 1.280000e+02 : f32
    %8 = vector.broadcast %cst_4 : f32 to vector<8x1xf32>
    %9 = arith.divf %7, %8 : vector<8x1xf32>
    %10 = vector.broadcast %9 : vector<8x1xf32> to vector<8x128xf32>
    %11 = arith.subf %0, %10 : vector<8x128xf32>
    %12 = arith.mulf %11, %11 : vector<8x128xf32>
    %cst_5 = arith.constant dense<0.000000e+00> : vector<8xf32>
    %13 = vector.multi_reduction <add>, %12, %cst_5 [1] : vector<8x128xf32> to vector<8xf32>
    %14 = vector.shape_cast %13 : vector<8xf32> to vector<8x1xf32>
    %cst_6 = arith.constant 1.270000e+02 : f32
    %15 = vector.broadcast %cst_6 : f32 to vector<8x1xf32>
    %16 = arith.divf %14, %15 : vector<8x1xf32>
    %17 = math.sqrt %16 : vector<8x1xf32>
    %cst_7 = arith.constant 9.99999997E-7 : f32
    %18 = vector.broadcast %cst_7 : f32 to vector<8x1xf32>
    %19 = arith.addf %17, %18 : vector<8x1xf32>
    %20 = vector.broadcast %19 : vector<8x1xf32> to vector<8x128xf32>
    %21 = arith.divf %11, %20 : vector<8x128xf32>
    %22 = vector.broadcast %3 : vector<1x128xf32> to vector<8x128xf32>
    %23 = arith.mulf %22, %21 : vector<8x128xf32>
    %24 = vector.broadcast %4 : vector<1x128xf32> to vector<8x128xf32>
    %25 = arith.addf %23, %24 : vector<8x128xf32>
    %c0_8 = arith.constant 0 : index
    %c0_9 = arith.constant 0 : index
    %c0_10 = arith.constant 0 : index
    %26 = vector.load %arg2[%c0_8, %c0_9, %c0_10] : memref<2x128x128xf32, #tpu.memory_space<vmem>>, vector<1x128x128xf32>
    %27 = vector.shape_cast %26 : vector<1x128x128xf32> to vector<128x128xf32>
    %cst_11 = arith.constant dense<0.000000e+00> : vector<8x128xf32>
    %28 = tpu.matmul %25, %27, %cst_11 {dimension_numbers = #tpu.dot_dimension_numbers<[1], [0], [0], [1], [0, 0, 1, 1], [], []>} : vector<8x128xf32>, vector<128x128xf32>, vector<8x128xf32> -> vector<8x128xf32>
    %29 = vector.broadcast %5 : vector<1x128xf32> to vector<8x128xf32>
    %30 = arith.addf %28, %29 : vector<8x128xf32>
    %31 = arith.addf %0, %30 : vector<8x128xf32>
    %c1 = arith.constant 1 : index
    %c0_12 = arith.constant 0 : index
    %c0_13 = arith.constant 0 : index
    %32 = vector.load %arg3[%c1, %c0_12, %c0_13] : memref<2x3x128xf32, #tpu.memory_space<vmem>>, vector<1x3x128xf32>
    %33 = vector.shape_cast %32 : vector<1x3x128xf32> to vector<3x128xf32>
    %34 = vector.extract_strided_slice %33 {offsets = [0, 0], sizes = [1, 128], strides = [1, 1]} : vector<3x128xf32> to vector<1x128xf32>
    %35 = vector.extract_strided_slice %33 {offsets = [1, 0], sizes = [1, 128], strides = [1, 1]} : vector<3x128xf32> to vector<1x128xf32>
    %36 = vector.extract_strided_slice %33 {offsets = [2, 0], sizes = [1, 128], strides = [1, 1]} : vector<3x128xf32> to vector<1x128xf32>
    %cst_14 = arith.constant dense<0.000000e+00> : vector<8xf32>
    %37 = vector.multi_reduction <add>, %31, %cst_14 [1] : vector<8x128xf32> to vector<8xf32>
    %38 = vector.shape_cast %37 : vector<8xf32> to vector<8x1xf32>
    %cst_15 = arith.constant 1.280000e+02 : f32
    %39 = vector.broadcast %cst_15 : f32 to vector<8x1xf32>
    %40 = arith.divf %38, %39 : vector<8x1xf32>
    %41 = vector.broadcast %40 : vector<8x1xf32> to vector<8x128xf32>
    %42 = arith.subf %31, %41 : vector<8x128xf32>
    %43 = arith.mulf %42, %42 : vector<8x128xf32>
    %cst_16 = arith.constant dense<0.000000e+00> : vector<8xf32>
    %44 = vector.multi_reduction <add>, %43, %cst_16 [1] : vector<8x128xf32> to vector<8xf32>
    %45 = vector.shape_cast %44 : vector<8xf32> to vector<8x1xf32>
    %cst_17 = arith.constant 1.270000e+02 : f32
    %46 = vector.broadcast %cst_17 : f32 to vector<8x1xf32>
    %47 = arith.divf %45, %46 : vector<8x1xf32>
    %48 = math.sqrt %47 : vector<8x1xf32>
    %cst_18 = arith.constant 9.99999997E-7 : f32
    %49 = vector.broadcast %cst_18 : f32 to vector<8x1xf32>
    %50 = arith.addf %48, %49 : vector<8x1xf32>
    %51 = vector.broadcast %50 : vector<8x1xf32> to vector<8x128xf32>
    %52 = arith.divf %42, %51 : vector<8x128xf32>
    %53 = vector.broadcast %34 : vector<1x128xf32> to vector<8x128xf32>
    %54 = arith.mulf %53, %52 : vector<8x128xf32>
    %55 = vector.broadcast %35 : vector<1x128xf32> to vector<8x128xf32>
    %56 = arith.addf %54, %55 : vector<8x128xf32>
    %c1_19 = arith.constant 1 : index
    %c0_20 = arith.constant 0 : index
    %c0_21 = arith.constant 0 : index
    %57 = vector.load %arg2[%c1_19, %c0_20, %c0_21] : memref<2x128x128xf32, #tpu.memory_space<vmem>>, vector<1x128x128xf32>
    %58 = vector.shape_cast %57 : vector<1x128x128xf32> to vector<128x128xf32>
    %cst_22 = arith.constant dense<0.000000e+00> : vector<8x128xf32>
    %59 = tpu.matmul %56, %58, %cst_22 {dimension_numbers = #tpu.dot_dimension_numbers<[1], [0], [0], [1], [0, 0, 1, 1], [], []>} : vector<8x128xf32>, vector<128x128xf32>, vector<8x128xf32> -> vector<8x128xf32>
    %60 = vector.broadcast %36 : vector<1x128xf32> to vector<8x128xf32>
    %61 = arith.addf %59, %60 : vector<8x128xf32>
    %62 = arith.addf %31, %61 : vector<8x128xf32>
    %c0_23 = arith.constant 0 : index
    %c0_24 = arith.constant 0 : index
    %63 = vector.load %arg4[%c0_23, %c0_24] : memref<2x128xf32, #tpu.memory_space<vmem>>, vector<2x128xf32>
    %64 = vector.extract_strided_slice %63 {offsets = [0, 0], sizes = [1, 128], strides = [1, 1]} : vector<2x128xf32> to vector<1x128xf32>
    %65 = vector.extract_strided_slice %63 {offsets = [1, 0], sizes = [1, 128], strides = [1, 1]} : vector<2x128xf32> to vector<1x128xf32>
    %cst_25 = arith.constant dense<0.000000e+00> : vector<8xf32>
    %66 = vector.multi_reduction <add>, %62, %cst_25 [1] : vector<8x128xf32> to vector<8xf32>
    %67 = vector.shape_cast %66 : vector<8xf32> to vector<8x1xf32>
    %cst_26 = arith.constant 1.280000e+02 : f32
    %68 = vector.broadcast %cst_26 : f32 to vector<8x1xf32>
    %69 = arith.divf %67, %68 : vector<8x1xf32>
    %70 = vector.broadcast %69 : vector<8x1xf32> to vector<8x128xf32>
    %71 = arith.subf %62, %70 : vector<8x128xf32>
    %72 = arith.mulf %71, %71 : vector<8x128xf32>
    %cst_27 = arith.constant dense<0.000000e+00> : vector<8xf32>
    %73 = vector.multi_reduction <add>, %72, %cst_27 [1] : vector<8x128xf32> to vector<8xf32>
    %74 = vector.shape_cast %73 : vector<8xf32> to vector<8x1xf32>
    %cst_28 = arith.constant 1.270000e+02 : f32
    %75 = vector.broadcast %cst_28 : f32 to vector<8x1xf32>
    %76 = arith.divf %74, %75 : vector<8x1xf32>
    %77 = math.sqrt %76 : vector<8x1xf32>
    %cst_29 = arith.constant 9.99999997E-7 : f32
    %78 = vector.broadcast %cst_29 : f32 to vector<8x1xf32>
    %79 = arith.addf %77, %78 : vector<8x1xf32>
    %80 = vector.broadcast %79 : vector<8x1xf32> to vector<8x128xf32>
    %81 = arith.divf %71, %80 : vector<8x128xf32>
    %82 = vector.broadcast %64 : vector<1x128xf32> to vector<8x128xf32>
    %83 = arith.mulf %82, %81 : vector<8x128xf32>
    %84 = vector.broadcast %65 : vector<1x128xf32> to vector<8x128xf32>
    %85 = arith.addf %83, %84 : vector<8x128xf32>
    %c0_30 = arith.constant 0 : index
    %c0_31 = arith.constant 0 : index
    %86 = vector.load %arg5[%c0_30, %c0_31] : memref<8x128xf32, #tpu.memory_space<vmem>>, vector<8x128xf32>
    tpu.vector_store %arg5[%c0_30, %c0_31], %85 {strides = array<i32>} : memref<8x128xf32, #tpu.memory_space<vmem>>, vector<8x128xf32>,
    return
  }
  func.func @transform_0(%arg0: i32) -> (i32, i32) {
    %c0_i32 = arith.constant 0 : i32
    %c0_i32_0 = arith.constant 0 : i32
    return %arg0, %c0_i32 : i32, i32
  }
  func.func @transform_1(%arg0: i32) -> (i32, i32, i32) {
    %c0_i32 = arith.constant 0 : i32
    %c0_i32_0 = arith.constant 0 : i32
    %c0_i32_1 = arith.constant 0 : i32
    %c0_i32_2 = arith.constant 0 : i32
    return %c0_i32, %c0_i32_0, %c0_i32_1 : i32, i32, i32
  }
  func.func @transform_2(%arg0: i32) -> (i32, i32, i32) {
    %c0_i32 = arith.constant 0 : i32
    %c0_i32_0 = arith.constant 0 : i32
    %c0_i32_1 = arith.constant 0 : i32
    %c0_i32_2 = arith.constant 0 : i32
    return %c0_i32, %c0_i32_0, %c0_i32_1 : i32, i32, i32
  }
  func.func @transform_3(%arg0: i32) -> (i32, i32) {
    %c0_i32 = arith.constant 0 : i32
    %c0_i32_0 = arith.constant 0 : i32
    %c0_i32_1 = arith.constant 0 : i32
    return %c0_i32, %c0_i32_0 : i32, i32
  }
  func.func @transform_4(%arg0: i32) -> (i32, i32) {
    %c0_i32 = arith.constant 0 : i32
    %c0_i32_0 = arith.constant 0 : i32
    return %arg0, %c0_i32 : i32, i32
  }
}

</mosaic_0001>

<llo_original>
// kernel: tpu_custom_call.1
$region0: #{tpu_custom_call.1}
  #allocation0 [shape = 'u32[]', space=smem, size = 0x4, offset = 0x4, fixed_abs, tag = 'smem constant byte address 0x4 - core index']
  #allocation1 [shape = 'u32[144,128]{1,0:T(1,128)}', space=vmem, size = 0x12000, scoped, tag = 'internal scratch']
  %s0 = inlined_call_operand.hbm [shape: f32[16,128], index: 0, kind: input, shape index: {}]
  %s1 = inlined_call_operand.hbm [shape: f32[2,128,128], index: 1, kind: input, shape index: {}]
  %s2 = inlined_call_operand.vmem [shape: f32[2,3,128], index: 2, kind: input, shape index: {}]
  %s3 = inlined_call_operand.vmem [shape: f32[2,128], index: 3, kind: input, shape index: {}]
  %s4 = inlined_call_operand.hbm [shape: f32[16,128], index: 4, kind: output, shape index: {}]
  %s5 = sld [smem:[#allocation0]]
  $region57: #{tpu_custom_call.1} parent=0
    _
  %s7 = ssub.s32 1, %s5
  %s8 = scalar_select 0, %s7, %s5
  $region1: #{tpu_custom_call.1} parent=0
    #allocation2 [shape = 'u8[8192]{0}', space=vmem, size = 0x2000, scoped, tag = 'input window, operand 0']
    #allocation3 [shape = 's32[2]{0}', space=sflag, size = 0x8, scoped, tag = 'scoped memory for tpu_custom_call.1']
    #allocation4 [shape = 's32[2]{0}', space=sflag, size = 0x8, scoped, tag = 'scoped memory for tpu_custom_call.1']
    #allocation5 [shape = 'u8[131072]{0}', space=vmem, size = 0x20000, scoped, tag = 'input window, operand 1, single buffered']
    #allocation6 [shape = 's32[1]{0}', space=sflag, size = 0x4, scoped, tag = 'scoped memory for tpu_custom_call.1']
    #allocation7 [shape = 'u8[8192]{0}', space=vmem, size = 0x2000, scoped, tag = 'output window, operand 0']
    %9 = vsyncpa [#allocation3], 0
    %s10 = scalar_lea.sflag [#allocation3], 1
    %11 = vsyncpa %s10, 0
    %12 = vsyncpa [#allocation6], 0
    %13 = vsyncpa [#allocation4], 0
    %s14 = scalar_lea.sflag [#allocation4], 1
    %15 = vsyncpa %s14, 0
    loop: start=0, step=1, limit=4
    $region2: #{tpu_custom_call.1} parent=1 // loop_pre_header
      _
    $region3: #{tpu_custom_call.1} parent=1 // loop_header
      %s17 = sphi 0, %s21
      %p18 = scmp.ge.s32.totalorder %s17, 4
      %s27 = sphi 0, %s29
      %s30 = sphi 0, %s27
      %s31 = sphi 0, %s30
      %s47 = sphi 0, %s31
      %s51 = sphi 0, %s51
      %s53 = sphi 0, %s51
      %s54 = sphi 0, %s53
      %s68 = sphi 0, %s54
      %s72 = sphi 0, %s72
      %s74 = sphi 0, %s72
      %s75 = sphi 0, %s74
      %s89 = sphi 0, %s75
      %s93 = sphi 0, %s93
      %s95 = sphi 0, %s93
      %s96 = sphi 0, %s95
      %s110 = sphi 0, %s96
      %s116 = sphi 0, %s118
      %s119 = sphi 0, %s116
      %s120 = sphi 0, %s119
      %s136 = sphi 0, %s120
    $region4: #{tpu_custom_call.1} parent=1 // loop_header_branch
      %20 = sbr.rel (%p18) target = $region8
    $region5: #{tpu_custom_call.1} parent=1 // loop_body
      %s22 = ssub.s32 %s17, 1
      %s23 = ssub.s32 %s17, 2
      %s24 = sadd.s32 %s17, 1
      %s25 = ssub.s32 %s17, %s24
      %p26 = scmp.eq.s32.totalorder %s25, 0
      %s28 = sadd.s32 %s27, 1
      %s29 = scalar_select %p26, %s27, %s28
      %p32 = pneg %p26
      %p33 = scmp.eq.s32.totalorder %s17, 1
      %p34 = por %p32, %p33
      %p35 = scmp.ne.s32.totalorder %s27, %s30
      %p36 = scmp.eq.s32.totalorder %s17, 0
      %p37 = por %p35, %p36
      %p38 = scmp.ne.s32.totalorder %s27, %s30
      %p39 = scmp.eq.s32.totalorder %s22, 1
      %p40 = por %p38, %p39
      %p41 = scmp.ne.s32.totalorder %s30, %s31
      %p42 = scmp.eq.s32.totalorder %s22, 0
      %p43 = por %p41, %p42
      %p44 = scmp.ne.s32.totalorder %s30, %s31
      %p45 = scmp.eq.s32.totalorder %s23, 1
      %p46 = por %p44, %p45
      %p48 = scmp.ne.s32.totalorder %s31, %s47
      %p49 = scmp.eq.s32.totalorder %s23, 0
      %p50 = por %p48, %p49
      %s52 = sadd.s32 %s51, 1
      %p55 = scmp.eq.s32.totalorder %s17, 1
      %p56 = scmp.ne.s32.totalorder %s51, %s53
      %p57 = scmp.eq.s32.totalorder %s17, 0
      %p58 = por %p56, %p57
      %p59 = scmp.ne.s32.totalorder %s51, %s53
      %p60 = scmp.eq.s32.totalorder %s22, 1
      %p61 = por %p59, %p60
      %p62 = scmp.ne.s32.totalorder %s53, %s54
      %p63 = scmp.eq.s32.totalorder %s22, 0
      %p64 = por %p62, %p63
      %p65 = scmp.ne.s32.totalorder %s53, %s54
      %p66 = scmp.eq.s32.totalorder %s23, 1
      %p67 = por %p65, %p66
      %p69 = scmp.ne.s32.totalorder %s54, %s68
      %p70 = scmp.eq.s32.totalorder %s23, 0
      %p71 = por %p69, %p70
      %s73 = sadd.s32 %s72, 1
      %p76 = scmp.eq.s32.totalorder %s17, 1
      %p77 = scmp.ne.s32.totalorder %s72, %s74
      %p78 = scmp.eq.s32.totalorder %s17, 0
      %p79 = por %p77, %p78
      %p80 = scmp.ne.s32.totalorder %s72, %s74
      %p81 = scmp.eq.s32.totalorder %s22, 1
      %p82 = por %p80, %p81
      %p83 = scmp.ne.s32.totalorder %s74, %s75
      %p84 = scmp.eq.s32.totalorder %s22, 0
      %p85 = por %p83, %p84
      %p86 = scmp.ne.s32.totalorder %s74, %s75
      %p87 = scmp.eq.s32.totalorder %s23, 1
      %p88 = por %p86, %p87
      %p90 = scmp.ne.s32.totalorder %s75, %s89
      %p91 = scmp.eq.s32.totalorder %s23, 0
      %p92 = por %p90, %p91
      %s94 = sadd.s32 %s93, 1
      %p97 = scmp.eq.s32.totalorder %s17, 1
      %p98 = scmp.ne.s32.totalorder %s93, %s95
      %p99 = scmp.eq.s32.totalorder %s17, 0
      %p100 = por %p98, %p99
      %p101 = scmp.ne.s32.totalorder %s93, %s95
      %p102 = scmp.eq.s32.totalorder %s22, 1
      %p103 = por %p101, %p102
      %p104 = scmp.ne.s32.totalorder %s95, %s96
      %p105 = scmp.eq.s32.totalorder %s22, 0
      %p106 = por %p104, %p105
      %p107 = scmp.ne.s32.totalorder %s95, %s96
      %p108 = scmp.eq.s32.totalorder %s23, 1
      %p109 = por %p107, %p108
      %p111 = scmp.ne.s32.totalorder %s96, %s110
      %p112 = scmp.eq.s32.totalorder %s23, 0
      %p113 = por %p111, %p112
      %s114 = ssub.s32 %s17, %s24
      %p115 = scmp.eq.s32.totalorder %s114, 0
      %s117 = sadd.s32 %s116, 1
      %s118 = scalar_select %p115, %s116, %s117
      %p121 = pneg %p115
      %p122 = scmp.eq.s32.totalorder %s17, 1
      %p123 = por %p121, %p122
      %p124 = scmp.ne.s32.totalorder %s116, %s119
      %p125 = scmp.eq.s32.totalorder %s17, 0
      %p126 = por %p124, %p125
      %p127 = scmp.ne.s32.totalorder %s116, %s119
      %p128 = scmp.eq.s32.totalorder %s22, 1
      %p129 = por %p127, %p128
      %p130 = scmp.ne.s32.totalorder %s119, %s120
      %p131 = scmp.eq.s32.totalorder %s22, 0
      %p132 = por %p130, %p131
      %p133 = scmp.ne.s32.totalorder %s119, %s120
      %p134 = scmp.eq.s32.totalorder %s23, 1
      %p135 = por %p133, %p134
      %p137 = scmp.ne.s32.totalorder %s120, %s136
      %p138 = scmp.eq.s32.totalorder %s23, 0
      %p139 = por %p137, %p138
      %p140 = scmp.le.s32.totalorder 1, %s17
      %p141 = scmp.lt.s32.totalorder %s17, 3
      %p142 = pnand %p140, %p141
      %p143 = pneg %p142
      // Predicated region
      $region9: #{tpu_custom_call.1} parent=5 // pred_check
        _
      $region10: #{tpu_custom_call.1} parent=5 // pred_check_branch
        %145 = sbr.rel (%p142) target = $region12
      $region11: #{tpu_custom_call.1} parent=5 // pred_region
        %s146 = ssub.s32 %s17, 1
        // Predicated region
        $region13: #{tpu_custom_call.1} parent=11 // pred_check
          %p147 = pneg %p64
        $region14: #{tpu_custom_call.1} parent=11 // pred_check_branch
          %149 = sbr.rel (%p147) target = $region16
        $region15: #{tpu_custom_call.1} parent=11 // pred_region
          %s151 = ssub.s32 4096, 4096
          %152 = vsyncadd [#allocation6], %s151
          %s153 = sshll.u32 [#allocation5], 4
          %s154 = int_to_ptr.vmem [resolvable:$true] %s153
          %159 = dma.hbm_to_vmem [thread:$0]  %s1, 4096, %s154, [#allocation6], 128, 128, 8
        $region16: #{tpu_custom_call.1} parent=11 // pred_fallthru
          _
        // Predicated region
        $region17: #{tpu_custom_call.1} parent=11 // pred_check
          %p160 = pneg %p85
        $region18: #{tpu_custom_call.1} parent=11 // pred_check_branch
          %162 = sbr.rel (%p160) target = $region20
        $region19: #{tpu_custom_call.1} parent=11 // pred_region
          _
        $region20: #{tpu_custom_call.1} parent=11 // pred_fallthru
          _
        // Predicated region
        $region21: #{tpu_custom_call.1} parent=11 // pred_check
          %p163 = pneg %p106
        $region22: #{tpu_custom_call.1} parent=11 // pred_check_branch
          %165 = sbr.rel (%p163) target = $region24
        $region23: #{tpu_custom_call.1} parent=11 // pred_region
          _
        $region24: #{tpu_custom_call.1} parent=11 // pred_fallthru
          _
      $region12: #{tpu_custom_call.1} parent=5 // pred_fallthru
        _
      %p166 = scmp.lt.s32.totalorder %s17, 2
      // Predicated region
      $region25: #{tpu_custom_call.1} parent=5 // pred_check
        %p167 = pneg %p166
      $region26: #{tpu_custom_call.1} parent=5 // pred_check_branch
        %169 = sbr.rel (%p167) target = $region28
      $region27: #{tpu_custom_call.1} parent=5 // pred_region
        // Predicated region
        $region29: #{tpu_custom_call.1} parent=27 // pred_check
          %p170 = pneg %p37
        $region30: #{tpu_custom_call.1} parent=27 // pred_check_branch
          %172 = sbr.rel (%p170) target = $region32
        $region31: #{tpu_custom_call.1} parent=27 // pred_region
          %s173 = sand.u32 %s27, 1
          %s174 = scalar_lea.sflag [#allocation3], %s173
          %s175 = sand.u32 %s27, 1
          %s176 = smul.addr %s175, 8
          %s177 = scalar_lea.vmem [#allocation2], %s176
          %s179 = ssub.s32 128, 128
          %180 = vsyncadd %s174, %s179
          %s181 = smul.addr %s17, 128
          %s182 = scalar_lea.hbm %s0, %s181
          %s184 = sshll.u32 %s177, 4
          %s185 = int_to_ptr.vmem [resolvable:$true] %s184
          %187 = dma.hbm_to_vmem [thread:$0]  %s182, 128, %s185, %s174
        $region32: #{tpu_custom_call.1} parent=27 // pred_fallthru
          _
      $region28: #{tpu_custom_call.1} parent=5 // pred_fallthru
        _
      %p188 = scmp.le.s32.totalorder 1, %s17
      %p189 = scmp.lt.s32.totalorder %s17, 3
      %p190 = pnand %p188, %p189
      %p191 = pneg %p190
      // Predicated region
      $region33: #{tpu_custom_call.1} parent=5 // pred_check
        _
      $region34: #{tpu_custom_call.1} parent=5 // pred_check_branch
        %193 = sbr.rel (%p190) target = $region36
      $region35: #{tpu_custom_call.1} parent=5 // pred_region
        %s194 = ssub.s32 %s17, 1
        %s195 = sand.u32 %s30, 1
        %s196 = scalar_lea.sflag [#allocation3], %s195
        %s197 = sand.u32 %s30, 1
        %s198 = smul.addr %s197, 8
        %s199 = scalar_lea.vmem [#allocation2], %s198
        // Predicated region
        $region37: #{tpu_custom_call.1} parent=35 // pred_check
          %p200 = pneg %p43
        $region38: #{tpu_custom_call.1} parent=35 // pred_check_branch
          %202 = sbr.rel (%p200) target = $region40
        $region39: #{tpu_custom_call.1} parent=35 // pred_region
          %203 = dma.done %s196, 128
        $region40: #{tpu_custom_call.1} parent=35 // pred_fallthru
          _
        // Predicated region
        $region41: #{tpu_custom_call.1} parent=35 // pred_check
          %p204 = pneg %p64
        $region42: #{tpu_custom_call.1} parent=35 // pred_check_branch
          %206 = sbr.rel (%p204) target = $region44
        $region43: #{tpu_custom_call.1} parent=35 // pred_region
          %207 = dma.done [#allocation6], 4096
        $region44: #{tpu_custom_call.1} parent=35 // pred_fallthru
          _
        %s208 = sand.u32 %s30, 1
        %s209 = scalar_lea.sflag [#allocation3], %s208
        %s210 = sand.u32 %s30, 1
        %s211 = smul.addr %s210, 8
        %s212 = scalar_lea.vmem [#allocation2], %s211
        %p213 = pneg %p43
        %p214 = pneg %p40
        %p215 = pneg %p64
        %p216 = pneg %p61
        %p217 = pneg %p85
        %p218 = pneg %p82
        %p219 = pneg %p106
        %p220 = pneg %p103
        %p221 = pneg %p132
        %p222 = pneg %p129
        %s223 = sand.u32 %s119, 1
        %s224 = scalar_lea.sflag [#allocation4], %s223
        %s225 = sand.u32 %s119, 1
        %s226 = smul.addr %s225, 8
        %s227 = scalar_lea.vmem [#allocation7], %s226
        %v228 = vld [vmem:[%s199] sm:$0xff]
        %v229 = vld [vmem:[%s2] sm:$0x7]
        %230 = vadd.xlane.f32.xlu0 %v228
        %v231 = vpop.xlane.xlu0 %230
        %v232 = vrcp.pop 128.0
        %v233 = vmul.f32 %v231, %v232
        %v234 = vsub.f32 %v228, %v233
        %v235 = vmul.f32 %v234, %v234
        %236 = vadd.xlane.f32.xlu0 %v235
        %v237 = vpop.xlane.xlu0 %236
        %v238 = vrcp.pop 127.0
        %v239 = vmul.f32 %v237, %v238
        %v240 = vrsqrt.pop %v239
        %v241 = vmul.f32 %v239, %v240
        %vm242 = vcmp.eq.f32.partialorder %v239, inf
        %v243 = vsel %vm242, %v239, %v241
        %vm244 = vcmp.eq.f32.partialorder %v239, 0.0
        %v245 = vand.u32 %v239, 2147483648
        %v246 = vsel %vm244, %v245, %v243
        %v247 = vadd.f32 %v246, 1e-06
        %v248 = vrcp.pop %v247
        %v249 = vmul.f32 %v234, %v248
        %v250 = vlaneseq
        %v251 = vshrl.u32 %v250, 7
        %v252 = vsub.s32 0, %v251
        %v253 = vrot.slane %v229, %v252
        %v254 = vmul.f32 %v253, %v249
        %v255 = vlaneseq
        %v256 = vshrl.u32 %v255, 7
        %v257 = vsub.s32 1, %v256
        %v258 = vrot.slane %v229, %v257
        %v259 = vadd.f32 %v254, %v258
        %v260 = vld [vmem:[#allocation5] sm:$0xff]
        %v261 = vld [vmem:[#allocation5 + $0x8] sm:$0xff]
        %v262 = vld [vmem:[#allocation5 + $0x10] sm:$0xff]
        %v263 = vld [vmem:[#allocation5 + $0x18] sm:$0xff]
        %v264 = vld [vmem:[#allocation5 + $0x20] sm:$0xff]
        %v265 = vld [vmem:[#allocation5 + $0x28] sm:$0xff]
        %v266 = vld [vmem:[#allocation5 + $0x30] sm:$0xff]
        %v267 = vld [vmem:[#allocation5 + $0x38] sm:$0xff]
        %v268 = vld [vmem:[#allocation5 + $0x40] sm:$0xff]
        %v269 = vld [vmem:[#allocation5 + $0x48] sm:$0xff]
        %v270 = vld [vmem:[#allocation5 + $0x50] sm:$0xff]
        %v271 = vld [vmem:[#allocation5 + $0x58] sm:$0xff]
        %v272 = vld [vmem:[#allocation5 + $0x60] sm:$0xff]
        %v273 = vld [vmem:[#allocation5 + $0x68] sm:$0xff]
        %v274 = vld [vmem:[#allocation5 + $0x70] sm:$0xff]
        %v275 = vld [vmem:[#allocation5 + $0x78] sm:$0xff]
        %v276 = vlaneseq
        %v277 = vshrl.u32 %v276, 7
        %v278 = vsub.s32 2, %v277
        %v279 = vrot.slane %v229, %v278
        %280 = vmatprep.subr.mxu0 0.0
        %281 = vmatpush1.msra.mxu0 %v260
        %282 = vmatprep.subr.mxu0 0.0
        %283 = vmatpush1.msra.mxu0 %v261
        %284 = vmatprep.subr.mxu0 0.0
        %285 = vmatpush1.msra.mxu0 %v262
        %286 = vmatprep.subr.mxu0 0.0
        %287 = vmatpush1.msra.mxu0 %v263
        %288 = vmatprep.subr.mxu0 0.0
        %289 = vmatpush1.msra.mxu0 %v264
        %290 = vmatprep.subr.mxu0 0.0
        %291 = vmatpush1.msra.mxu0 %v265
        %292 = vmatprep.subr.mxu0 0.0
        %293 = vmatpush1.msra.mxu0 %v266
        %294 = vmatprep.subr.mxu0 0.0
        %295 = vmatpush1.msra.mxu0 %v267
        %296 = vmatprep.subr.mxu0 0.0
        %297 = vmatpush1.msra.mxu0 %v268
        %298 = vmatprep.subr.mxu0 0.0
        %299 = vmatpush1.msra.mxu0 %v269
        %300 = vmatprep.subr.mxu0 0.0
        %301 = vmatpush1.msra.mxu0 %v270
        %302 = vmatprep.subr.mxu0 0.0
        %303 = vmatpush1.msra.mxu0 %v271
        %304 = vmatprep.subr.mxu0 0.0
        %305 = vmatpush1.msra.mxu0 %v272
        %306 = vmatprep.subr.mxu0 0.0
        %307 = vmatpush1.msra.mxu0 %v273
        %308 = vmatprep.subr.mxu0 0.0
        %309 = vmatpush1.msra.mxu0 %v274
        %310 = vmatprep.subr.mxu0 0.0
        %311 = vmatpush1.msra.mxu0 %v275
        %312 = vmatprep.subr.mxu0 0.0
        %313 = vmatpush1.msra.mxu0 0.0
        %314 = vmatprep.subr.mxu0 0.0
        %315 = vmatpush1.msra.mxu0 0.0
        %316 = vmatprep.subr.mxu0 0.0
        %317 = vmatpush1.msra.mxu0 0.0
        %318 = vmatprep.subr.mxu0 0.0
        %319 = vmatpush1.msra.mxu0 0.0
        %320 = vmatprep.subr.mxu0 0.0
        %321 = vmatpush1.msra.mxu0 0.0
        %322 = vmatprep.subr.mxu0 0.0
        %323 = vmatpush1.msra.mxu0 0.0
        %324 = vmatprep.subr.mxu0 0.0
        %325 = vmatpush1.msra.mxu0 0.0
        %326 = vmatprep.subr.mxu0 0.0
        %327 = vmatpush1.msra.mxu0 0.0
        %328 = vmatprep.subr.mxu0 0.0
        %329 = vmatpush1.msra.mxu0 0.0
        %330 = vmatprep.subr.mxu0 0.0
        %331 = vmatpush1.msra.mxu0 0.0
        %332 = vmatprep.subr.mxu0 0.0
        %333 = vmatpush1.msra.mxu0 0.0
        %334 = vmatprep.subr.mxu0 0.0
        %335 = vmatpush1.msra.mxu0 0.0
        %336 = vmatprep.subr.mxu0 0.0
        %337 = vmatpush1.msra.mxu0 0.0
        %338 = vmatprep.subr.mxu0 0.0
        %339 = vmatpush1.msra.mxu0 0.0
        %340 = vmatprep.subr.mxu0 0.0
        %341 = vmatpush1.msra.mxu0 0.0
        %342 = vmatprep.subr.mxu0 0.0
        %343 = vmatpush1.msra.mxu0 0.0
        %344 = vmatprep.mubr.f32.mxu0 0.0
        %345 = vmatmul.mubr.f32.gmra.mrb[0].mxu0 %v259
        %v346 = vpop.f32.mrb[0].mxu0
        %v347 = vadd.f32 %v279, %v346
        %v348 = vpop.f32.mrb[0].mxu0
        %349 = vdwg.mxu0
        %v350 = vadd.f32 %v228, %v347
        %s351 = scalar_lea.vmem %s2, 4
        %v352 = vld [vmem:[%s351] sm:$0x7]
        %353 = vadd.xlane.f32.xlu0 %v350
        %v354 = vpop.xlane.xlu0 %353
        %v355 = vmul.f32 %v354, %v232
        %v356 = vsub.f32 %v350, %v355
        %v357 = vmul.f32 %v356, %v356
        %358 = vadd.xlane.f32.xlu0 %v357
        %v359 = vpop.xlane.xlu0 %358
        %v360 = vmul.f32 %v359, %v238
        %v361 = vrsqrt.pop %v360
        %v362 = vmul.f32 %v360, %v361
        %vm363 = vcmp.eq.f32.partialorder %v360, inf
        %v364 = vsel %vm363, %v360, %v362
        %vm365 = vcmp.eq.f32.partialorder %v360, 0.0
        %v366 = vand.u32 %v360, 2147483648
        %v367 = vsel %vm365, %v366, %v364
        %v368 = vadd.f32 %v367, 1e-06
        %v369 = vrcp.pop %v368
        %v370 = vmul.f32 %v356, %v369
        %v371 = vlaneseq
        %v372 = vshrl.u32 %v371, 7
        %v373 = vsub.s32 0, %v372
        %v374 = vrot.slane %v352, %v373
        %v375 = vmul.f32 %v374, %v370
        %v376 = vlaneseq
        %v377 = vshrl.u32 %v376, 7
        %v378 = vsub.s32 1, %v377
        %v379 = vrot.slane %v352, %v378
        %v380 = vadd.f32 %v375, %v379
        %s381 = scalar_lea.vmem [#allocation5], 128
        %v382 = vld [vmem:[%s381] sm:$0xff]
        %v383 = vld [vmem:[%s381 + $0x8] sm:$0xff]
        %v384 = vld [vmem:[%s381 + $0x10] sm:$0xff]
        %v385 = vld [vmem:[%s381 + $0x18] sm:$0xff]
        %v386 = vld [vmem:[%s381 + $0x20] sm:$0xff]
        %v387 = vld [vmem:[%s381 + $0x28] sm:$0xff]
        %v388 = vld [vmem:[%s381 + $0x30] sm:$0xff]
        %v389 = vld [vmem:[%s381 + $0x38] sm:$0xff]
        %v390 = vld [vmem:[%s381 + $0x40] sm:$0xff]
        %v391 = vld [vmem:[%s381 + $0x48] sm:$0xff]
        %v392 = vld [vmem:[%s381 + $0x50] sm:$0xff]
        %v393 = vld [vmem:[%s381 + $0x58] sm:$0xff]
        %v394 = vld [vmem:[%s381 + $0x60] sm:$0xff]
        %v395 = vld [vmem:[%s381 + $0x68] sm:$0xff]
        %v396 = vld [vmem:[%s381 + $0x70] sm:$0xff]
        %v397 = vld [vmem:[%s381 + $0x78] sm:$0xff]
        %v398 = vlaneseq
        %v399 = vshrl.u32 %v398, 7
        %v400 = vsub.s32 2, %v399
        %v401 = vrot.slane %v352, %v400
        %402 = vmatprep.subr.mxu0 0.0
        %403 = vmatpush1.msra.mxu0 %v382
        %404 = vmatprep.subr.mxu0 0.0
        %405 = vmatpush1.msra.mxu0 %v383
        %406 = vmatprep.subr.mxu0 0.0
        %407 = vmatpush1.msra.mxu0 %v384
        %408 = vmatprep.subr.mxu0 0.0
        %409 = vmatpush1.msra.mxu0 %v385
        %410 = vmatprep.subr.mxu0 0.0
        %411 = vmatpush1.msra.mxu0 %v386
        %412 = vmatprep.subr.mxu0 0.0
        %413 = vmatpush1.msra.mxu0 %v387
        %414 = vmatprep.subr.mxu0 0.0
        %415 = vmatpush1.msra.mxu0 %v388
        %416 = vmatprep.subr.mxu0 0.0
        %417 = vmatpush1.msra.mxu0 %v389
        %418 = vmatprep.subr.mxu0 0.0
        %419 = vmatpush1.msra.mxu0 %v390
        %420 = vmatprep.subr.mxu0 0.0
        %421 = vmatpush1.msra.mxu0 %v391
        %422 = vmatprep.subr.mxu0 0.0
        %423 = vmatpush1.msra.mxu0 %v392
        %424 = vmatprep.subr.mxu0 0.0
        %425 = vmatpush1.msra.mxu0 %v393
        %426 = vmatprep.subr.mxu0 0.0
        %427 = vmatpush1.msra.mxu0 %v394
        %428 = vmatprep.subr.mxu0 0.0
        %429 = vmatpush1.msra.mxu0 %v395
        %430 = vmatprep.subr.mxu0 0.0
        %431 = vmatpush1.msra.mxu0 %v396
        %432 = vmatprep.subr.mxu0 0.0
        %433 = vmatpush1.msra.mxu0 %v397
        %434 = vmatprep.subr.mxu0 0.0
        %435 = vmatpush1.msra.mxu0 0.0
        %436 = vmatprep.subr.mxu0 0.0
        %437 = vmatpush1.msra.mxu0 0.0
        %438 = vmatprep.subr.mxu0 0.0
        %439 = vmatpush1.msra.mxu0 0.0
        %440 = vmatprep.subr.mxu0 0.0
        %441 = vmatpush1.msra.mxu0 0.0
        %442 = vmatprep.subr.mxu0 0.0
        %443 = vmatpush1.msra.mxu0 0.0
        %444 = vmatprep.subr.mxu0 0.0
        %445 = vmatpush1.msra.mxu0 0.0
        %446 = vmatprep.subr.mxu0 0.0
        %447 = vmatpush1.msra.mxu0 0.0
        %448 = vmatprep.subr.mxu0 0.0
        %449 = vmatpush1.msra.mxu0 0.0
        %450 = vmatprep.subr.mxu0 0.0
        %451 = vmatpush1.msra.mxu0 0.0
        %452 = vmatprep.subr.mxu0 0.0
        %453 = vmatpush1.msra.mxu0 0.0
        %454 = vmatprep.subr.mxu0 0.0
        %455 = vmatpush1.msra.mxu0 0.0
        %456 = vmatprep.subr.mxu0 0.0
        %457 = vmatpush1.msra.mxu0 0.0
        %458 = vmatprep.subr.mxu0 0.0
        %459 = vmatpush1.msra.mxu0 0.0
        %460 = vmatprep.subr.mxu0 0.0
        %461 = vmatpush1.msra.mxu0 0.0
        %462 = vmatprep.subr.mxu0 0.0
        %463 = vmatpush1.msra.mxu0 0.0
        %464 = vmatprep.subr.mxu0 0.0
        %465 = vmatpush1.msra.mxu0 0.0
        %466 = vmatprep.mubr.f32.mxu0 0.0
        %467 = vmatmul.mubr.f32.gmra.mrb[0].mxu0 %v380
        %v468 = vpop.f32.mrb[0].mxu0
        %v469 = vadd.f32 %v401, %v468
        %v470 = vpop.f32.mrb[0].mxu0
        %471 = vdwg.mxu0
        %v472 = vadd.f32 %v350, %v469
        %v473 = vld [vmem:[%s3] sm:$0x3]
        %474 = vadd.xlane.f32.xlu0 %v472
        %v475 = vpop.xlane.xlu0 %474
        %v476 = vmul.f32 %v475, %v232
        %v477 = vsub.f32 %v472, %v476
        %v478 = vmul.f32 %v477, %v477
        %479 = vadd.xlane.f32.xlu0 %v478
        %v480 = vpop.xlane.xlu0 %479
        %v481 = vmul.f32 %v480, %v238
        %v482 = vrsqrt.pop %v481
        %v483 = vmul.f32 %v481, %v482
        %vm484 = vcmp.eq.f32.partialorder %v481, inf
        %v485 = vsel %vm484, %v481, %v483
        %vm486 = vcmp.eq.f32.partialorder %v481, 0.0
        %v487 = vand.u32 %v481, 2147483648
        %v488 = vsel %vm486, %v487, %v485
        %v489 = vadd.f32 %v488, 1e-06
        %v490 = vrcp.pop %v489
        %v491 = vmul.f32 %v477, %v490
        %v492 = vlaneseq
        %v493 = vshrl.u32 %v492, 7
        %v494 = vsub.s32 0, %v493
        %v495 = vrot.slane %v473, %v494
        %v496 = vmul.f32 %v495, %v491
        %v497 = vlaneseq
        %v498 = vshrl.u32 %v497, 7
        %v499 = vsub.s32 1, %v498
        %v500 = vrot.slane %v473, %v499
        %v501 = vadd.f32 %v496, %v500
        %502 = vst [vmem:[%s227] sm:$0xff] %v501
        %s503 = sand.u32 %s119, 1
        %s504 = scalar_lea.sflag [#allocation4], %s503
        %s505 = sand.u32 %s119, 1
        %s506 = smul.addr %s505, 8
        %s507 = scalar_lea.vmem [#allocation7], %s506
        // Predicated region
        $region45: #{tpu_custom_call.1} parent=35 // pred_check
          %p508 = pneg %p129
        $region46: #{tpu_custom_call.1} parent=35 // pred_check_branch
          %510 = sbr.rel (%p508) target = $region48
        $region47: #{tpu_custom_call.1} parent=35 // pred_region
          %s512 = ssub.s32 128, 128
          %513 = vsyncadd %s504, %s512
          %s514 = smul.addr %s22, 128
          %s515 = scalar_lea.hbm %s4, %s514
          %s517 = sshll.u32 %s507, 4
          %s518 = int_to_ptr.vmem [resolvable:$true] %s517
          %520 = dma.vmem_to_hbm [thread:$0]  %s518, 128, %s515, %s504
        $region48: #{tpu_custom_call.1} parent=35 // pred_fallthru
          _
      $region36: #{tpu_custom_call.1} parent=5 // pred_fallthru
        _
      %p521 = scmp.le.s32.totalorder 2, %s17
      // Predicated region
      $region49: #{tpu_custom_call.1} parent=5 // pred_check
        %p522 = pneg %p521
      $region50: #{tpu_custom_call.1} parent=5 // pred_check_branch
        %524 = sbr.rel (%p522) target = $region52
      $region51: #{tpu_custom_call.1} parent=5 // pred_region
        %s525 = ssub.s32 %s17, 2
        // Predicated region
        $region53: #{tpu_custom_call.1} parent=51 // pred_check
          %p526 = pneg %p135
        $region54: #{tpu_custom_call.1} parent=51 // pred_check_branch
          %528 = sbr.rel (%p526) target = $region56
        $region55: #{tpu_custom_call.1} parent=51 // pred_region
          %s529 = sand.u32 %s120, 1
          %s530 = scalar_lea.sflag [#allocation4], %s529
          %s531 = sand.u32 %s120, 1
          %s532 = smul.addr %s531, 8
          %s533 = scalar_lea.vmem [#allocation7], %s532
          %534 = dma.done %s530, 128
        $region56: #{tpu_custom_call.1} parent=51 // pred_fallthru
          _
      $region52: #{tpu_custom_call.1} parent=5 // pred_fallthru
        _
    $region6: #{tpu_custom_call.1} parent=1 // loop_footer
      %s21 = sadd.s32 1, %s17
    $region7: #{tpu_custom_call.1} parent=1 // loop_footer_branch
      %16 = sbr.rel target = $region3
    $region8: #{tpu_custom_call.1} parent=1 // loop_exit
      _
    %535 = vsyncpa [#allocation3], 1
    %s536 = scalar_lea.sflag [#allocation3], 1
    %537 = vsyncpa %s536, 1
    %538 = vsyncpa [#allocation6], 1
    %539 = vsyncpa [#allocation4], 1
    %s540 = scalar_lea.sflag [#allocation4], 1
    %541 = vsyncpa %s540, 1

</llo_original>
